<compile_context>
chip_gen: v6e
topology: v6e:2x2x1
jax: 0.10.0
libtpu: 0.0.40
codegen_flags: <defaults>
</compile_context>

<pallas_src>
import functools

import jax
import jax.numpy as jnp
from jax.experimental import pallas as pl
from jax.experimental.pallas import tpu as pltpu

_VMEM_LIMIT = 32 * 1024 * 1024        # safe scoped-VMEM limit on v5e/v6e/v7x
_XW_RESIDENT_BYTES = 8 * 1024 * 1024  # resident-XW budget (v7x-safe even 2x)


def _round_up(x, m):
    return (x + m - 1) // m * m


def _largest_divisor_tile(n, candidates):
    for t in candidates:
        if n % t == 0:
            return t
    return n


def _row_tile(n_pad, cap=1024):
    """Largest row tile <= cap dividing n_pad, keeping >=2 row blocks when
    n_pad > 128 (so the 'parallel' grid axis feeds both v7x TensorCores)."""
    if n_pad <= 128:
        return n_pad
    for t in (1024, 512, 256, 128):
        if t <= cap and n_pad % t == 0 and n_pad // t >= 2:
            return t
    return 128


# ----------------------------- Pallas kernels ------------------------------


def xw_kernel(x_ref, w_ref, o_ref):
    """Feature transform tile: out = X @ W for one row tile (bf16 MXU)."""
    o_ref[...] = jnp.dot(
        x_ref[...], w_ref[...], preferred_element_type=jnp.float32
    ).astype(o_ref.dtype)


def xw_matmul(x_bf16, w_bf16):
    n_pad, f_pad = x_bf16.shape
    d_pad = w_bf16.shape[1]
    tm = _row_tile(n_pad, cap=512)
    grid = (n_pad // tm,)
    cost = pl.CostEstimate(
        flops=2 * n_pad * f_pad * d_pad,
        transcendentals=0,
        bytes_accessed=(n_pad * f_pad + f_pad * d_pad + n_pad * d_pad) * 2,
    )
    return pl.pallas_call(
        xw_kernel,
        out_shape=jax.ShapeDtypeStruct((n_pad, d_pad), jnp.bfloat16),
        grid_spec=pltpu.PrefetchScalarGridSpec(
            num_scalar_prefetch=0,
            grid=grid,
            in_specs=[
                pl.BlockSpec((tm, f_pad), lambda i: (i, 0)),
                pl.BlockSpec((f_pad, d_pad), lambda i: (0, 0)),
            ],
            out_specs=pl.BlockSpec((tm, d_pad), lambda i: (i, 0)),
        ),
        compiler_params=pltpu.CompilerParams(
            dimension_semantics=("parallel",),
            vmem_limit_bytes=_VMEM_LIMIT,
        ),
        cost_estimate=cost,
    )(x_bf16, w_bf16)


def gcn_agg_kernel(a_ref, xw_ref, b_ref, o_ref, acc_ref, *, apply_relu,
                   xw_resident, tk):
    """Aggregation: out = relu?(A @ XW + b), accumulated over the node axis."""
    k = pl.program_id(1)

    @pl.when(k == 0)
    def _():
        acc_ref[...] = jnp.zeros_like(acc_ref)

    if xw_resident:
        start = pl.multiple_of(k * tk, tk)
        xw = xw_ref[pl.ds(start, tk), :]
    else:
        xw = xw_ref[...]
    acc_ref[...] += jnp.dot(a_ref[...], xw, preferred_element_type=jnp.float32)

    @pl.when(k == pl.num_programs(1) - 1)
    def _():
        h = acc_ref[...] + b_ref[...]
        if apply_relu:
            h = jnp.maximum(h, 0.0)
        o_ref[...] = h.astype(o_ref.dtype)


def gcn_aggregate(a_bf16, xw_bf16, b_pad, *, apply_relu, out_dtype):
    n_pad = a_bf16.shape[0]
    d_pad = xw_bf16.shape[1]
    tm = _row_tile(n_pad, cap=1024)
    tk = _largest_divisor_tile(n_pad, (512, 256, 128))
    xw_resident = n_pad * d_pad * 2 <= _XW_RESIDENT_BYTES
    grid = (n_pad // tm, n_pad // tk)

    if xw_resident:
        # Whole XW held in VMEM (constant block index): read from HBM once.
        xw_spec = pl.BlockSpec((n_pad, d_pad), lambda i, k: (0, 0))
        xw_read_bytes = n_pad * d_pad * 2
    else:
        xw_spec = pl.BlockSpec((tk, d_pad), lambda i, k: (k, 0))
        xw_read_bytes = (n_pad // tm) * n_pad * d_pad * 2

    out_itemsize = 2 if out_dtype == jnp.bfloat16 else 4
    cost = pl.CostEstimate(
        flops=2 * n_pad * n_pad * d_pad,
        transcendentals=0,
        bytes_accessed=(n_pad * n_pad * 2 + xw_read_bytes
                        + n_pad * d_pad * out_itemsize),
    )
    return pl.pallas_call(
        functools.partial(gcn_agg_kernel, apply_relu=apply_relu,
                          xw_resident=xw_resident, tk=tk),
        out_shape=jax.ShapeDtypeStruct((n_pad, d_pad), out_dtype),
        grid_spec=pltpu.PrefetchScalarGridSpec(
            num_scalar_prefetch=0,
            grid=grid,
            in_specs=[
                pl.BlockSpec((tm, tk), lambda i, k: (i, k)),
                xw_spec,
                pl.BlockSpec((1, d_pad), lambda i, k: (0, 0)),
            ],
            out_specs=pl.BlockSpec((tm, d_pad), lambda i, k: (i, 0)),
            scratch_shapes=[pltpu.VMEM((tm, d_pad), jnp.float32)],
        ),
        compiler_params=pltpu.CompilerParams(
            dimension_semantics=("parallel", "arbitrary"),
            vmem_limit_bytes=_VMEM_LIMIT,
        ),
        cost_estimate=cost,
    )(a_bf16, xw_bf16, b_pad)


def gcn_layer(a_bf16, x_bf16, w, b, *, apply_relu, out_dtype):
    """One GCN layer on padded bf16 inputs: relu?(A @ (X @ W) + b)."""
    f_in, d_out = w.shape
    f_pad = x_bf16.shape[1]
    d_pad = _round_up(d_out, 128)
    w_pad = jnp.zeros((f_pad, d_pad), jnp.bfloat16).at[:f_in, :d_out].set(
        w.astype(jnp.bfloat16))
    b_pad = jnp.zeros((1, d_pad), jnp.float32).at[0, :d_out].set(b)
    xw = xw_matmul(x_bf16, w_pad)                     # (n_pad, d_pad) bf16
    return gcn_aggregate(a_bf16, xw, b_pad, apply_relu=apply_relu,
                         out_dtype=out_dtype)


def predictor_kernel(ut_ref, vt_ref, w1a_ref, w1b_ref, b1_ref, w2_ref, b2_ref,
                     o_ref):
    """scores = w2^T relu(W1a^T u^T + W1b^T v^T + b1) + b2, lane-dense row."""
    h = jnp.dot(w1a_ref[...], ut_ref[...], preferred_element_type=jnp.float32)
    h = h + jnp.dot(w1b_ref[...], vt_ref[...],
                    preferred_element_type=jnp.float32)
    h = jnp.maximum(h + b1_ref[...], 0.0)             # (pd_pad, TP)
    # Final Linear(pd, 1) as VPU multiply + sublane reduce; output stays
    # lane-dense along the pair axis.
    s = jnp.sum(h * w2_ref[...], axis=0, keepdims=True) + b2_ref[...]
    o_ref[...] = s.astype(o_ref.dtype)


def predictor(u_t, v_t, w1a_t, w1b_t, b1_col, w2_col, b2):
    d_pad, p_pad = u_t.shape
    pd_pad = w1a_t.shape[0]
    tp = _largest_divisor_tile(p_pad, (512, 256, 128))
    grid = (p_pad // tp,)
    cost = pl.CostEstimate(
        flops=4 * p_pad * d_pad * pd_pad,
        transcendentals=0,
        bytes_accessed=(2 * d_pad * p_pad + 2 * pd_pad * d_pad + p_pad) * 4,
    )
    return pl.pallas_call(
        predictor_kernel,
        out_shape=jax.ShapeDtypeStruct((1, p_pad), jnp.float32),
        grid_spec=pltpu.PrefetchScalarGridSpec(
            num_scalar_prefetch=0,
            grid=grid,
            in_specs=[
                pl.BlockSpec((d_pad, tp), lambda p: (0, p)),
                pl.BlockSpec((d_pad, tp), lambda p: (0, p)),
                pl.BlockSpec((pd_pad, d_pad), lambda p: (0, 0)),
                pl.BlockSpec((pd_pad, d_pad), lambda p: (0, 0)),
                pl.BlockSpec((pd_pad, 1), lambda p: (0, 0)),
                pl.BlockSpec((pd_pad, 1), lambda p: (0, 0)),
                pl.BlockSpec((1, 1), lambda p: (0, 0)),
            ],
            out_specs=pl.BlockSpec((1, tp), lambda p: (0, p)),
        ),
        compiler_params=pltpu.CompilerParams(
            dimension_semantics=("parallel",),
            vmem_limit_bytes=_VMEM_LIMIT,
        ),
        cost_estimate=cost,
    )(u_t, v_t, w1a_t, w1b_t, b1_col, w2_col, b2)


# ------------------------------ glue (JAX) ---------------------------------


def build_normalized_adjacency_bf16(edge_index, edge_weight, num_nodes, n_pad):
    """GCN-normalized adjacency D^-1/2 (A + I) D^-1/2, built directly at the
    padded shape; scatter -> degree -> scale+cast in one fused expression."""
    src = edge_index[0].astype(jnp.int32)
    dst = edge_index[1].astype(jnp.int32)
    if edge_weight is None:
        edge_weight = jnp.ones((src.shape[0],), jnp.float32)
    adj = jnp.zeros((n_pad, n_pad), jnp.float32)
    adj = adj.at[src, dst].add(edge_weight)
    diag = jnp.arange(num_nodes)
    adj = adj.at[diag, diag].add(1.0)                  # self loops
    deg = adj.sum(axis=1)
    d_inv_sqrt = jnp.where(deg > 0, jax.lax.rsqrt(deg), 0.0)
    # Row/col scaling + bf16 cast fuse into a single pass over the matrix.
    return (adj * d_inv_sqrt[:, None] * d_inv_sqrt[None, :]).astype(
        jnp.bfloat16)


def yelp_recommender_forward(params, x, edge_index, edge_weight=None,
                             user_indices=None, business_indices=None):
    n, f_in = x.shape
    n_pad = _round_up(n, 128)          # pad to lane width only (not TK)
    f_pad = _round_up(f_in, 128)

    a_bf16 = build_normalized_adjacency_bf16(edge_index, edge_weight, n, n_pad)
    x_bf16 = jnp.zeros((n_pad, f_pad), jnp.bfloat16).at[:n, :f_in].set(
        x.astype(jnp.bfloat16))

    # GNN (2-layer GCN) — hot path in Pallas kernels; layer-1 output is bf16
    # since it only feeds layer-2's X@W.
    h_bf16 = gcn_layer(a_bf16, x_bf16, params["gcn_w1"], params["gcn_b1"],
                       apply_relu=True, out_dtype=jnp.bfloat16)
    emb_pad = gcn_layer(a_bf16, h_bf16, params["gcn_w2"], params["gcn_b2"],
                        apply_relu=False, out_dtype=jnp.float32)

    d_emb = params["gcn_w2"].shape[1]
    if user_indices is None or business_indices is None:
        return emb_pad[:n, :d_emb]

    d_pad = emb_pad.shape[1]
    p = user_indices.shape[0]
    p_pad = _round_up(p, 128)
    u_idx = jnp.zeros((p_pad,), jnp.int32).at[:p].set(
        user_indices.astype(jnp.int32))
    b_idx = jnp.zeros((p_pad,), jnp.int32).at[:p].set(
        business_indices.astype(jnp.int32))
    # TODO(synk): fuse this gather+transpose into the predictor kernel via
    # scalar-prefetched pl.Element row gather when num_pairs is large.
    u_t = emb_pad[u_idx].T                 # (d_pad, p_pad)
    v_t = emb_pad[b_idx].T                 # (d_pad, p_pad)

    # Split pred_w1 into user/business halves (no JAX-side concat), transposed
    # so the MXU output width is the pair axis.  pd padded to 16 sublanes.
    pd = params["pred_b1"].shape[0]
    pd_pad = _round_up(pd, 16)
    w1 = params["pred_w1"]                 # (2*d_emb, pd)
    w1a_t = jnp.zeros((pd_pad, d_pad), jnp.float32).at[:pd, :d_emb].set(
        w1[:d_emb].T)
    w1b_t = jnp.zeros((pd_pad, d_pad), jnp.float32).at[:pd, :d_emb].set(
        w1[d_emb:].T)
    b1_col = jnp.zeros((pd_pad, 1), jnp.float32).at[:pd, 0].set(
        params["pred_b1"])
    w2_col = jnp.zeros((pd_pad, 1), jnp.float32).at[:pd, 0].set(
        params["pred_w2"][:, 0])
    b2 = params["pred_b2"].reshape(1, 1).astype(jnp.float32)

    scores_row = predictor(u_t, v_t, w1a_t, w1b_t, b1_col, w2_col, b2)
    return jnp.squeeze(scores_row[0, :p])  # matches torch .squeeze() semantics


# ------------------------------- reference ---------------------------------


def reference_forward(params, x, edge_index, edge_weight,
                      user_indices, business_indices):
    """Plain-JAX reference using the same bf16-in / f32-accumulate precision."""
    n = x.shape[0]
    a_bf = build_normalized_adjacency_bf16(edge_index, edge_weight, n, n)

    def layer(xin_bf16, w, b, relu, out_bf16):
        xw = jnp.dot(xin_bf16, w.astype(jnp.bfloat16),
                     preferred_element_type=jnp.float32).astype(jnp.bfloat16)
        hh = jnp.dot(a_bf, xw, preferred_element_type=jnp.float32) + b
        if relu:
            hh = jnp.maximum(hh, 0.0)
        return hh.astype(jnp.bfloat16) if out_bf16 else hh

    h = layer(x.astype(jnp.bfloat16), params["gcn_w1"], params["gcn_b1"],
              True, True)
    emb = layer(h, params["gcn_w2"], params["gcn_b2"], False, False)
    pe = jnp.concatenate([emb[user_indices], emb[business_indices]], axis=1)
    hh = jnp.maximum(pe @ params["pred_w1"] + params["pred_b1"], 0.0)
    return jnp.squeeze(hh @ params["pred_w2"] + params["pred_b2"])


# --------------------------------- main -------------------------------------

if __name__ == "__main__":
    # Small, deterministic setup.
    num_nodes = 32
    in_features = 16
    hidden_dim = 32
    embedding_dim = 32          # gnn_model.output_dim
    prediction_dim = 16
    num_edges = 64
    num_pairs = 8

    key = jax.random.PRNGKey(0)
    keys = jax.random.split(key, 12)

    x = jax.random.normal(keys[0], (num_nodes, in_features), jnp.float32)
    edge_index = jax.random.randint(keys[1], (2, num_edges), 0, num_nodes)
    edge_weight = jax.random.uniform(keys[2], (num_edges,), jnp.float32)
    user_indices = jax.random.randint(keys[3], (num_pairs,), 0, num_nodes)
    business_indices = jax.random.randint(keys[4], (num_pairs,), 0, num_nodes)

    def init(k, shape, fan_in):
        bound = 1.0 / jnp.sqrt(jnp.float32(fan_in))
        return jax.random.uniform(k, shape, jnp.float32, -bound, bound)

    params = {
        # GCN layers
        "gcn_w1": init(keys[5], (in_features, hidden_dim), in_features),
        "gcn_b1": init(keys[6], (hidden_dim,), in_features),
        "gcn_w2": init(keys[7], (hidden_dim, embedding_dim), hidden_dim),
        "gcn_b2": init(keys[8], (embedding_dim,), hidden_dim),
        # predictor: Linear(2*emb, prediction_dim) -> ReLU -> Linear(pred, 1)
        "pred_w1": init(keys[9], (2 * embedding_dim, prediction_dim),
                        2 * embedding_dim),
        "pred_b1": init(keys[10], (prediction_dim,), 2 * embedding_dim),
        "pred_w2": init(keys[11], (prediction_dim, 1), prediction_dim),
        "pred_b2": jnp.zeros((1,), jnp.float32),
    }

    scores = yelp_recommender_forward(
        params, x, edge_index, edge_weight, user_indices, business_indices)
    scores = jax.block_until_ready(scores)

    ref = reference_forward(params, x, edge_index, edge_weight,
                            user_indices, business_indices)
    assert scores.shape == (num_pairs,)
    assert jnp.allclose(scores, ref, atol=5e-3, rtol=5e-3), (
        jnp.max(jnp.abs(scores - ref)))

    print("KERNEL_OK")
</pallas_src>

<mosaic_0001>
module attributes {stable_mosaic.version = 11 : i64} {
  func.func @xw_kernel(%arg0: i32, %arg1: memref<128x128xbf16, #tpu.memory_space<vmem>>, %arg2: memref<128x128xbf16, #tpu.memory_space<vmem>>, %arg3: memref<128x128xbf16, #tpu.memory_space<vmem>>) attributes {dimension_semantics = [#tpu.dimension_semantics<parallel>], iteration_bounds = array<i64: 1>, scalar_prefetch = 0 : i64, scratch_operands = 0 : i64, tpu.core_type = #tpu.core_type<tc>, window_params = [{transform_indices = @transform_0, window_bounds = array<i64: 128, 128>}, {pipeline_mode = #tpu.pipeline_mode<synchronous>, transform_indices = @transform_1, window_bounds = array<i64: 128, 128>}, {transform_indices = @transform_2, window_bounds = array<i64: 128, 128>}]} {
    %c0 = arith.constant 0 : index
    %c0_0 = arith.constant 0 : index
    %0 = vector.load %arg1[%c0, %c0_0] : memref<128x128xbf16, #tpu.memory_space<vmem>>, vector<128x128xbf16>
    %c0_1 = arith.constant 0 : index
    %c0_2 = arith.constant 0 : index
    %1 = vector.load %arg2[%c0_1, %c0_2] : memref<128x128xbf16, #tpu.memory_space<vmem>>, vector<128x128xbf16>
    %cst = arith.constant dense<0.000000e+00> : vector<128x128xf32>
    %2 = tpu.matmul %0, %1, %cst {dimension_numbers = #tpu.dot_dimension_numbers<[1], [0], [0], [1], [0, 0, 1, 1], [], []>} : vector<128x128xbf16>, vector<128x128xbf16>, vector<128x128xf32> -> vector<128x128xf32>
    %3 = arith.truncf %2 : vector<128x128xf32> to vector<128x128xbf16>
    %c0_3 = arith.constant 0 : index
    %c0_4 = arith.constant 0 : index
    %4 = vector.load %arg3[%c0_3, %c0_4] : memref<128x128xbf16, #tpu.memory_space<vmem>>, vector<128x128xbf16>
    tpu.vector_store %arg3[%c0_3, %c0_4], %3 {strides = array<i32>} : memref<128x128xbf16, #tpu.memory_space<vmem>>, vector<128x128xbf16>,
    return
  }
  func.func @transform_0(%arg0: i32) -> (i32, i32) {
    %c0_i32 = arith.constant 0 : i32
    %c0_i32_0 = arith.constant 0 : i32
    return %arg0, %c0_i32 : i32, i32
  }
  func.func @transform_1(%arg0: i32) -> (i32, i32) {
    %c0_i32 = arith.constant 0 : i32
    %c0_i32_0 = arith.constant 0 : i32
    %c0_i32_1 = arith.constant 0 : i32
    return %c0_i32, %c0_i32_0 : i32, i32
  }
  func.func @transform_2(%arg0: i32) -> (i32, i32) {
    %c0_i32 = arith.constant 0 : i32
    %c0_i32_0 = arith.constant 0 : i32
    return %arg0, %c0_i32 : i32, i32
  }
}

</mosaic_0001>

<llo_original>
// kernel: tpu_custom_call.1
$region0: #{tpu_custom_call.1}
  #allocation0 [shape = 'u32[]', space=smem, size = 0x4, offset = 0x4, fixed_abs, tag = 'smem constant byte address 0x4 - core index']
  #allocation1 [shape = 'u32[144,128]{1,0:T(1,128)}', space=vmem, size = 0x12000, scoped, tag = 'internal scratch']
  %s0 = inlined_call_operand.hbm [shape: bf16[128,128], index: 0, kind: input, shape index: {}]
  %s1 = inlined_call_operand.hbm [shape: bf16[128,128], index: 1, kind: input, shape index: {}]
  %s2 = inlined_call_operand.hbm [shape: bf16[128,128], index: 2, kind: output, shape index: {}]
  %s3 = sld [smem:[#allocation0]]
  $region26: #{tpu_custom_call.1} parent=0
    _
  %s5 = ssub.s32 1, %s3
  %s6 = scalar_select 0, %s5, %s3
  $region1: #{tpu_custom_call.1} parent=0
    #allocation2 [shape = 'u8[32768]{0}', space=vmem, size = 0x8000, scoped, tag = 'input window, operand 0, single buffered']
    #allocation3 [shape = 's32[1]{0}', space=sflag, size = 0x4, scoped, tag = 'scoped memory for tpu_custom_call.1']
    #allocation4 [shape = 's32[1]{0}', space=sflag, size = 0x4, scoped, tag = 'scoped memory for tpu_custom_call.1']
    #allocation5 [shape = 'u8[32768]{0}', space=vmem, size = 0x8000, scoped, tag = 'input window, operand 1, single buffered']
    #allocation6 [shape = 's32[1]{0}', space=sflag, size = 0x4, scoped, tag = 'scoped memory for tpu_custom_call.1']
    #allocation7 [shape = 'u8[32768]{0}', space=vmem, size = 0x8000, scoped, tag = 'output window, operand 0, single buffered']
    %7 = vsyncpa [#allocation3], 0
    %8 = vsyncpa [#allocation6], 0
    %9 = vsyncpa [#allocation4], 0
    // Predicated region
    $region2: #{tpu_custom_call.1} parent=1 // pred_check
      _
    $region3: #{tpu_custom_call.1} parent=1 // pred_check_branch
      %11 = sbr.rel (0) target = $region5
    $region4: #{tpu_custom_call.1} parent=1 // pred_region
      %s13 = ssub.s32 1024, 1024
      %14 = vsyncadd [#allocation3], %s13
      %s15 = sshll.u32 [#allocation2], 4
      %s16 = int_to_ptr.vmem [resolvable:$true] %s15
      %21 = dma.hbm_to_vmem [thread:$0]  %s0, 1024, %s16, [#allocation3], 64, 64, 4
    $region5: #{tpu_custom_call.1} parent=1 // pred_fallthru
      _
    // Predicated region
    $region6: #{tpu_custom_call.1} parent=1 // pred_check
      _
    $region7: #{tpu_custom_call.1} parent=1 // pred_check_branch
      %23 = sbr.rel (0) target = $region9
    $region8: #{tpu_custom_call.1} parent=1 // pred_region
      %s25 = ssub.s32 1024, 1024
      %26 = vsyncadd [#allocation6], %s25
      %s27 = sshll.u32 [#allocation5], 4
      %s28 = int_to_ptr.vmem [resolvable:$true] %s27
      %33 = dma.hbm_to_vmem [thread:$0]  %s1, 1024, %s28, [#allocation6], 64, 64, 4
    $region9: #{tpu_custom_call.1} parent=1 // pred_fallthru
      _
    // Predicated region
    $region10: #{tpu_custom_call.1} parent=1 // pred_check
      _
    $region11: #{tpu_custom_call.1} parent=1 // pred_check_branch
      %35 = sbr.rel (0) target = $region13
    $region12: #{tpu_custom_call.1} parent=1 // pred_region
      %36 = dma.done [#allocation3], 1024
    $region13: #{tpu_custom_call.1} parent=1 // pred_fallthru
      _
    // Predicated region
    $region14: #{tpu_custom_call.1} parent=1 // pred_check
      _
    $region15: #{tpu_custom_call.1} parent=1 // pred_check_branch
      %38 = sbr.rel (0) target = $region17
    $region16: #{tpu_custom_call.1} parent=1 // pred_region
      %39 = dma.done [#allocation6], 1024
    $region17: #{tpu_custom_call.1} parent=1 // pred_fallthru
      _
    %v41 = vld [vmem:[#allocation2] sm:$0xf]
    %v42 = vld [vmem:[#allocation2 + $0x4] sm:$0xf]
    %v43 = vld [vmem:[#allocation2 + $0x8] sm:$0xf]
    %v44 = vld [vmem:[#allocation2 + $0xc] sm:$0xf]
    %v45 = vld [vmem:[#allocation2 + $0x10] sm:$0xf]
    %v46 = vld [vmem:[#allocation2 + $0x14] sm:$0xf]
    %v47 = vld [vmem:[#allocation2 + $0x18] sm:$0xf]
    %v48 = vld [vmem:[#allocation2 + $0x1c] sm:$0xf]
    %v49 = vld [vmem:[#allocation2 + $0x20] sm:$0xf]
    %v50 = vld [vmem:[#allocation2 + $0x24] sm:$0xf]
    %v51 = vld [vmem:[#allocation2 + $0x28] sm:$0xf]
    %v52 = vld [vmem:[#allocation2 + $0x2c] sm:$0xf]
    %v53 = vld [vmem:[#allocation2 + $0x30] sm:$0xf]
    %v54 = vld [vmem:[#allocation2 + $0x34] sm:$0xf]
    %v55 = vld [vmem:[#allocation2 + $0x38] sm:$0xf]
    %v56 = vld [vmem:[#allocation2 + $0x3c] sm:$0xf]
    %v57 = vld [vmem:[#allocation5] sm:$0xf]
    %v58 = vld [vmem:[#allocation5 + $0x4] sm:$0xf]
    %v59 = vld [vmem:[#allocation5 + $0x8] sm:$0xf]
    %v60 = vld [vmem:[#allocation5 + $0xc] sm:$0xf]
    %v61 = vld [vmem:[#allocation5 + $0x10] sm:$0xf]
    %v62 = vld [vmem:[#allocation5 + $0x14] sm:$0xf]
    %v63 = vld [vmem:[#allocation5 + $0x18] sm:$0xf]
    %v64 = vld [vmem:[#allocation5 + $0x1c] sm:$0xf]
    %v65 = vld [vmem:[#allocation5 + $0x20] sm:$0xf]
    %v66 = vld [vmem:[#allocation5 + $0x24] sm:$0xf]
    %v67 = vld [vmem:[#allocation5 + $0x28] sm:$0xf]
    %v68 = vld [vmem:[#allocation5 + $0x2c] sm:$0xf]
    %v69 = vld [vmem:[#allocation5 + $0x30] sm:$0xf]
    %v70 = vld [vmem:[#allocation5 + $0x34] sm:$0xf]
    %v71 = vld [vmem:[#allocation5 + $0x38] sm:$0xf]
    %v72 = vld [vmem:[#allocation5 + $0x3c] sm:$0xf]
    %v89 = vunpack.c.l.b16 %v41
    %v90 = vunpack.c.l.b16 %v42
    %v91 = vunpack.c.l.b16 %v43
    %v92 = vunpack.c.l.b16 %v44
    %v93 = vunpack.c.l.b16 %v45
    %v94 = vunpack.c.l.b16 %v46
    %v95 = vunpack.c.l.b16 %v47
    %v96 = vunpack.c.l.b16 %v48
    %v97 = vunpack.c.l.b16 %v49
    %v98 = vunpack.c.l.b16 %v50
    %v99 = vunpack.c.l.b16 %v51
    %v100 = vunpack.c.l.b16 %v52
    %v101 = vunpack.c.l.b16 %v53
    %v102 = vunpack.c.l.b16 %v54
    %v103 = vunpack.c.l.b16 %v55
    %v104 = vunpack.c.l.b16 %v56
    %v105 = vpack.c.b16 %v90, %v89
    %v106 = vpack.c.b16 %v92, %v91
    %v107 = vpack.c.b16 %v94, %v93
    %v108 = vpack.c.b16 %v96, %v95
    %v109 = vpack.c.b16 %v98, %v97
    %v110 = vpack.c.b16 %v100, %v99
    %v111 = vpack.c.b16 %v102, %v101
    %v112 = vpack.c.b16 %v104, %v103
    %v137 = vunpack.c.l.b16 %v57
    %v138 = vunpack.c.l.b16 %v58
    %v139 = vunpack.c.l.b16 %v59
    %v140 = vunpack.c.l.b16 %v60
    %v141 = vunpack.c.l.b16 %v61
    %v142 = vunpack.c.l.b16 %v62
    %v143 = vunpack.c.l.b16 %v63
    %v144 = vunpack.c.l.b16 %v64
    %v145 = vunpack.c.l.b16 %v65
    %v146 = vunpack.c.l.b16 %v66
    %v147 = vunpack.c.l.b16 %v67
    %v148 = vunpack.c.l.b16 %v68
    %v149 = vunpack.c.l.b16 %v69
    %v150 = vunpack.c.l.b16 %v70
    %v151 = vunpack.c.l.b16 %v71
    %v152 = vunpack.c.l.b16 %v72
    %v153 = vpack.c.b16 %v138, %v137
    %v154 = vpack.c.b16 %v140, %v139
    %v155 = vpack.c.b16 %v142, %v141
    %v156 = vpack.c.b16 %v144, %v143
    %v157 = vpack.c.b16 %v146, %v145
    %v158 = vpack.c.b16 %v148, %v147
    %v159 = vpack.c.b16 %v150, %v149
    %v160 = vpack.c.b16 %v152, %v151
    %169 = vmatprep.subr.bf16.mxu0 0
    %170 = vmatpush1.bf16.msra.mxu0 %v160
    %171 = vmatprep.subr.bf16.mxu0 0
    %172 = vmatpush1.bf16.msra.mxu0 %v159
    %173 = vmatprep.subr.bf16.mxu0 0
    %174 = vmatpush1.bf16.msra.mxu0 %v158
    %175 = vmatprep.subr.bf16.mxu0 0
    %176 = vmatpush1.bf16.msra.mxu0 %v157
    %177 = vmatprep.subr.bf16.mxu0 0
    %178 = vmatpush1.bf16.msra.mxu0 %v156
    %179 = vmatprep.subr.bf16.mxu0 0
    %180 = vmatpush1.bf16.msra.mxu0 %v155
    %181 = vmatprep.subr.bf16.mxu0 0
    %182 = vmatpush1.bf16.msra.mxu0 %v154
    %183 = vmatprep.subr.bf16.mxu0 0
    %184 = vmatpush1.bf16.msra.mxu0 %v153
    %185 = vmatprep.subr.bf16.mxu0 0
    %186 = vmatpush2.bf16.msra.mxu0 0
    %187 = vmatprep.subr.bf16.mxu0 0
    %188 = vmatpush2.bf16.msra.mxu0 0
    %189 = vmatprep.subr.bf16.mxu0 0
    %190 = vmatpush2.bf16.msra.mxu0 0
    %191 = vmatprep.subr.bf16.mxu0 0
    %192 = vmatpush2.bf16.msra.mxu0 0
    %193 = vmatprep.subr.bf16.mxu0 0
    %194 = vmatpush2.bf16.msra.mxu0 0
    %195 = vmatprep.subr.bf16.mxu0 0
    %196 = vmatpush2.bf16.msra.mxu0 0
    %197 = vmatprep.subr.bf16.mxu0 0
    %198 = vmatpush2.bf16.msra.mxu0 0
    %199 = vmatprep.subr.bf16.mxu0 0
    %200 = vmatpush2.bf16.msra.mxu0 0
    %201 = vmatprep.mubr.bf16.mxu0 0
    %202 = vmatmul.mubr.bf16.gmra.mxu0 %v105
    %v203 = vpop.f32.mrf.mxu0
    %v204 = vadd.f32 0.0, %v203
    %v205 = vpop.f32.mrf.mxu0
    %v206 = vpop.f32.mrf.mxu0
    %v207 = vadd.f32 0.0, %v206
    %v208 = vpop.f32.mrf.mxu0
    %209 = vmatprep.mubr.bf16.mxu0 0
    %210 = vmatmul.mubr.bf16.gmra.mxu0 %v106
    %v211 = vpop.f32.mrf.mxu0
    %v212 = vadd.f32 0.0, %v211
    %v213 = vpop.f32.mrf.mxu0
    %v214 = vpop.f32.mrf.mxu0
    %v215 = vadd.f32 0.0, %v214
    %v216 = vpop.f32.mrf.mxu0
    %217 = vmatprep.mubr.bf16.mxu0 0
    %218 = vmatmul.mubr.bf16.gmra.mxu0 %v107
    %v219 = vpop.f32.mrf.mxu0
    %v220 = vadd.f32 0.0, %v219
    %v221 = vpop.f32.mrf.mxu0
    %v222 = vpop.f32.mrf.mxu0
    %v223 = vadd.f32 0.0, %v222
    %v224 = vpop.f32.mrf.mxu0
    %225 = vmatprep.mubr.bf16.mxu0 0
    %226 = vmatmul.mubr.bf16.gmra.mxu0 %v108
    %v227 = vpop.f32.mrf.mxu0
    %v228 = vadd.f32 0.0, %v227
    %v229 = vpop.f32.mrf.mxu0
    %v230 = vpop.f32.mrf.mxu0
    %v231 = vadd.f32 0.0, %v230
    %v232 = vpop.f32.mrf.mxu0
    %233 = vmatprep.mubr.bf16.mxu0 0
    %234 = vmatmul.mubr.bf16.gmra.mxu0 %v109
    %v235 = vpop.f32.mrf.mxu0
    %v236 = vadd.f32 0.0, %v235
    %v237 = vpop.f32.mrf.mxu0
    %v238 = vpop.f32.mrf.mxu0
    %v239 = vadd.f32 0.0, %v238
    %v240 = vpop.f32.mrf.mxu0
    %241 = vmatprep.mubr.bf16.mxu0 0
    %242 = vmatmul.mubr.bf16.gmra.mxu0 %v110
    %v243 = vpop.f32.mrf.mxu0
    %v244 = vadd.f32 0.0, %v243
    %v245 = vpop.f32.mrf.mxu0
    %v246 = vpop.f32.mrf.mxu0
    %v247 = vadd.f32 0.0, %v246
    %v248 = vpop.f32.mrf.mxu0
    %249 = vmatprep.mubr.bf16.mxu0 0
    %250 = vmatmul.mubr.bf16.gmra.mxu0 %v111
    %v251 = vpop.f32.mrf.mxu0
    %v252 = vadd.f32 0.0, %v251
    %v253 = vpop.f32.mrf.mxu0
    %v254 = vpop.f32.mrf.mxu0
    %v255 = vadd.f32 0.0, %v254
    %v256 = vpop.f32.mrf.mxu0
    %257 = vmatprep.mubr.bf16.mxu0 0
    %258 = vmatmul.mubr.bf16.gmra.mxu0 %v112
    %v259 = vpop.f32.mrf.mxu0
    %v260 = vadd.f32 0.0, %v259
    %v261 = vpop.f32.mrf.mxu0
    %v262 = vpop.f32.mrf.mxu0
    %v263 = vadd.f32 0.0, %v262
    %v264 = vpop.f32.mrf.mxu0
    %265 = vdwg.mxu0
    %v266 = vpack.c.bf16 %v207, %v204
    %v267 = vpack.c.bf16 %v215, %v212
    %v268 = vpack.c.bf16 %v223, %v220
    %v269 = vpack.c.bf16 %v231, %v228
    %v270 = vpack.c.bf16 %v239, %v236
    %v271 = vpack.c.bf16 %v247, %v244
    %v272 = vpack.c.bf16 %v255, %v252
    %v273 = vpack.c.bf16 %v263, %v260
    %v282 = vunpack.c.l.b16 %v266
    %v283 = vunpack.c.h.b16 %v266
    %v284 = vunpack.c.l.b16 %v267
    %v285 = vunpack.c.h.b16 %v267
    %v286 = vunpack.c.l.b16 %v268
    %v287 = vunpack.c.h.b16 %v268
    %v288 = vunpack.c.l.b16 %v269
    %v289 = vunpack.c.h.b16 %v269
    %v290 = vunpack.c.l.b16 %v270
    %v291 = vunpack.c.h.b16 %v270
    %v292 = vunpack.c.l.b16 %v271
    %v293 = vunpack.c.h.b16 %v271
    %v294 = vunpack.c.l.b16 %v272
    %v295 = vunpack.c.h.b16 %v272
    %v296 = vunpack.c.l.b16 %v273
    %v297 = vunpack.c.h.b16 %v273
    %v298 = vpack.c.b16 %v282, %v282
    %v299 = vpack.c.b16 %v283, %v283
    %v300 = vpack.c.b16 %v284, %v284
    %v301 = vpack.c.b16 %v285, %v285
    %v302 = vpack.c.b16 %v286, %v286
    %v303 = vpack.c.b16 %v287, %v287
    %v304 = vpack.c.b16 %v288, %v288
    %v305 = vpack.c.b16 %v289, %v289
    %v306 = vpack.c.b16 %v290, %v290
    %v307 = vpack.c.b16 %v291, %v291
    %v308 = vpack.c.b16 %v292, %v292
    %v309 = vpack.c.b16 %v293, %v293
    %v310 = vpack.c.b16 %v294, %v294
    %v311 = vpack.c.b16 %v295, %v295
    %v312 = vpack.c.b16 %v296, %v296
    %v313 = vpack.c.b16 %v297, %v297
    %330 = vst [vmem:[#allocation7] sm:$0xf] %v298
    %331 = vst [vmem:[#allocation7 + $0x4] sm:$0xf] %v299
    %332 = vst [vmem:[#allocation7 + $0x8] sm:$0xf] %v300
    %333 = vst [vmem:[#allocation7 + $0xc] sm:$0xf] %v301
    %334 = vst [vmem:[#allocation7 + $0x10] sm:$0xf] %v302
    %335 = vst [vmem:[#allocation7 + $0x14] sm:$0xf] %v303
    %336 = vst [vmem:[#allocation7 + $0x18] sm:$0xf] %v304
    %337 = vst [vmem:[#allocation7 + $0x1c] sm:$0xf] %v305
    %338 = vst [vmem:[#allocation7 + $0x20] sm:$0xf] %v306
    %339 = vst [vmem:[#allocation7 + $0x24] sm:$0xf] %v307
    %340 = vst [vmem:[#allocation7 + $0x28] sm:$0xf] %v308
    %341 = vst [vmem:[#allocation7 + $0x2c] sm:$0xf] %v309
    %342 = vst [vmem:[#allocation7 + $0x30] sm:$0xf] %v310
    %343 = vst [vmem:[#allocation7 + $0x34] sm:$0xf] %v311
    %344 = vst [vmem:[#allocation7 + $0x38] sm:$0xf] %v312
    %345 = vst [vmem:[#allocation7 + $0x3c] sm:$0xf] %v313
    // Predicated region
    $region18: #{tpu_custom_call.1} parent=1 // pred_check
      _
    $region19: #{tpu_custom_call.1} parent=1 // pred_check_branch
      %347 = sbr.rel (0) target = $region21
    $region20: #{tpu_custom_call.1} parent=1 // pred_region
      %s349 = ssub.s32 1024, 1024
      %350 = vsyncadd [#allocation4], %s349
      %s351 = sshll.u32 [#allocation7], 4
      %s352 = int_to_ptr.vmem [resolvable:$true] %s351
      %357 = dma.vmem_to_hbm [thread:$0]  %s352, 1024, %s2, [#allocation4], 64, 64, 4
    $region21: #{tpu_custom_call.1} parent=1 // pred_fallthru
      _
    // Predicated region
    $region22: #{tpu_custom_call.1} parent=1 // pred_check
      _
    $region23: #{tpu_custom_call.1} parent=1 // pred_check_branch
      %359 = sbr.rel (0) target = $region25
    $region24: #{tpu_custom_call.1} parent=1 // pred_region
      %360 = dma.done [#allocation4], 1024
    $region25: #{tpu_custom_call.1} parent=1 // pred_fallthru
      _
    %361 = vsyncpa [#allocation3], 1
    %362 = vsyncpa [#allocation6], 1
    %363 = vsyncpa [#allocation4], 1

</llo_original>
